<compile_context>
chip_gen: v7x
topology: tpu7x:2x2x1
jax: 0.10.0
libtpu: 0.0.40
codegen_flags: <defaults>
</compile_context>

<pallas_src>
import jax
import jax.numpy as jnp
from jax import lax
from jax.experimental import pallas as pl
from jax.experimental.pallas import tpu as pltpu

LANE = 128


def _round_up(x, m):
    return (x + m - 1) // m * m


# ----------------------------- Pallas kernels ----------------------------------------


def _matmul_relu_kernel(p_ref, w_ref, o_ref):
    # Down path: Conv2d(k4,s2,p1,no bias) as an MXU matmul over im2col patches, fused
    # with the following ReLU ("uprelu"). bf16 operands, f32 accumulation.
    y = jnp.dot(p_ref[...], w_ref[...], preferred_element_type=jnp.float32)
    o_ref[...] = jnp.maximum(y, 0.0).astype(o_ref.dtype)


def _matmul_shift_kernel(p_ref, w_ref, shift_ref, o_ref):
    # Up path: ConvTranspose2d(k4,s2,p1,no bias) in 4-phase (sub-pixel) form as one MXU
    # matmul. BatchNorm scale is pre-folded into the weight columns; only the
    # per-output-channel shift (broadcast over pixel rows) is applied here.
    y = jnp.dot(p_ref[...], w_ref[...], preferred_element_type=jnp.float32)
    o_ref[...] = (y + shift_ref[...]).astype(o_ref.dtype)


def _tiled_matmul(kernel, p, w, *extras, out_dtype, tile_m=256):
    """Row-tiled (M-axis) matmul launcher.

    p: (M, K) patch matrix, w: (K, Nlanes) weights with Nlanes % 128 == 0.
    The M axis is tiled into `tile_m`-row blocks ("parallel" -> pipelined + megacore);
    K and Nlanes stay whole per block (small for this module).
    """
    m, k = p.shape
    kw_, n = w.shape
    assert kw_ == k and n % LANE == 0

    tm = tile_m if m >= tile_m else _round_up(m, 8)
    m_pad = _round_up(m, tm)
    if m_pad != m:
        p = jnp.pad(p, ((0, m_pad - m), (0, 0)))

    in_specs = [pl.BlockSpec((tm, k), lambda i: (i, 0)),
                pl.BlockSpec((k, n), lambda i: (0, 0))]
    for e in extras:
        in_specs.append(pl.BlockSpec(e.shape, lambda i: (0, 0)))

    flops = 2 * m_pad * k * n
    bytes_accessed = (m_pad * k * p.dtype.itemsize + k * n * w.dtype.itemsize
                      + m_pad * n * jnp.dtype(out_dtype).itemsize)

    out = pl.pallas_call(
        kernel,
        out_shape=jax.ShapeDtypeStruct((m_pad, n), out_dtype),
        grid=(m_pad // tm,),
        in_specs=in_specs,
        out_specs=pl.BlockSpec((tm, n), lambda i: (i, 0)),
        compiler_params=pltpu.CompilerParams(
            dimension_semantics=("parallel",),
            vmem_limit_bytes=32 * 1024 * 1024),
        cost_estimate=pl.CostEstimate(flops=flops, transcendentals=0,
                                      bytes_accessed=bytes_accessed),
    )(p, w, *extras)
    return out[:m]


# ------------------------------ glue (plain JAX) --------------------------------------


def _im2col_nhwc(x, k, stride, pad):
    """x: (N,H,W,C) -> patches (N*Ho*Wo, k*k*C); column index = (kh*k+kw)*C + c."""
    n, h, w, c = x.shape
    xp = jnp.pad(x, ((0, 0), (pad, pad), (pad, pad), (0, 0)))
    ho = (h + 2 * pad - k) // stride + 1
    wo = (w + 2 * pad - k) // stride + 1
    cols = []
    for kh in range(k):
        for kw in range(k):
            cols.append(xp[:, kh:kh + stride * (ho - 1) + 1:stride,
                           kw:kw + stride * (wo - 1) + 1:stride, :])
    p = jnp.stack(cols, axis=3)                          # (N, Ho, Wo, k*k, C)
    return p.reshape(n * ho * wo, k * k * c), ho, wo


def _phase_weights(w_up):
    """ConvTranspose2d(k4,s2,p1) as a single (9*Cin, 4*Cout) matrix over 3x3 windows of
    the zero-padded (pad=1) down activation. Output column block p = r*2+c holds the
    sub-pixel phase (row parity r, col parity c); interleave back via pixel shuffle."""
    cin, cout = w_up.shape[0], w_up.shape[1]
    zeros = jnp.zeros((cin, cout), w_up.dtype)
    phase_blocks = []
    for r in range(2):
        for c in range(2):
            taps = []
            for dr in range(3):
                for dc in range(3):
                    kh = r + 3 - 2 * dr
                    kw = c + 3 - 2 * dc
                    if 0 <= kh <= 3 and 0 <= kw <= 3:
                        taps.append(w_up[:, :, kh, kw])  # (Cin, Cout)
                    else:
                        taps.append(zeros)
            phase_blocks.append(jnp.stack(taps, axis=0))  # (9, Cin, Cout)
    w9 = jnp.stack(phase_blocks, axis=-2)                 # (9, Cin, 4, Cout)
    return w9.reshape(9 * cin, 4 * cout)


def unet_innermost_forward(x, w_down, w_up, bn_gamma, bn_beta, bn_mean, bn_var,
                           eps=1e-5, tile_m=256):
    n, c_in, h, w = x.shape
    inner_nc = w_down.shape[0]        # Conv2d weight: (inner_nc, input_nc, 4, 4)
    outer_nc = w_up.shape[1]          # ConvTranspose2d weight: (inner_nc, outer_nc, 4, 4)
    ho, wo = h // 2, w // 2

    x_nhwc = jnp.transpose(x, (0, 2, 3, 1))               # channels on lanes

    # ---- down: LeakyReLU(0.2) (applied once, pre-im2col) -> Conv2d -> ReLU (in kernel)
    a = jnp.where(x_nhwc >= 0, x_nhwc, 0.2 * x_nhwc)
    p1, _, _ = _im2col_nhwc(a, k=4, stride=2, pad=1)      # (N*Ho*Wo, 16*Cin)
    w1 = jnp.transpose(w_down, (2, 3, 1, 0)).reshape(16 * c_in, inner_nc)
    n1 = _round_up(inner_nc, LANE)
    w1 = jnp.pad(w1, ((0, 0), (0, n1 - inner_nc)))        # lane-dense output channels
    z = _tiled_matmul(_matmul_relu_kernel,
                      p1.astype(jnp.bfloat16), w1.astype(jnp.bfloat16),
                      out_dtype=jnp.bfloat16, tile_m=tile_m)
    z = z[:, :inner_nc].reshape(n, ho, wo, inner_nc)

    # ---- up: ConvTranspose2d (sub-pixel / 4-phase) + eval-mode BatchNorm
    z_pad = jnp.pad(z, ((0, 0), (1, 1), (1, 1), (0, 0)))
    p2, _, _ = _im2col_nhwc(z_pad, k=3, stride=1, pad=0)  # (N*Ho*Wo, 9*inner_nc)
    inv_std = 1.0 / jnp.sqrt(bn_var + eps)
    scale = bn_gamma * inv_std                            # (outer_nc,)
    shift = bn_beta - bn_mean * scale                     # (outer_nc,)
    w9 = _phase_weights(w_up) * jnp.tile(scale, 4)[None, :]   # fold BN scale into weights
    n2 = _round_up(4 * outer_nc, LANE)
    w9 = jnp.pad(w9, ((0, 0), (0, n2 - 4 * outer_nc)))
    shift4 = jnp.pad(jnp.tile(shift, 4), (0, n2 - 4 * outer_nc)).reshape(1, n2)
    u4 = _tiled_matmul(_matmul_shift_kernel,
                       p2.astype(jnp.bfloat16), w9.astype(jnp.bfloat16),
                       shift4.astype(jnp.float32),
                       out_dtype=jnp.float32, tile_m=tile_m)
    u4 = u4[:, :4 * outer_nc].reshape(n, ho, wo, 2, 2, outer_nc)
    u = jnp.transpose(u4, (0, 1, 3, 2, 4, 5)).reshape(n, h, w, outer_nc)  # pixel shuffle

    # skip connection: torch.cat([x, self.model(x)], dim=1)
    out_nhwc = jnp.concatenate([x_nhwc, u.astype(x.dtype)], axis=-1)
    return jnp.transpose(out_nhwc, (0, 3, 1, 2))


# ------------------------------ pure-JAX reference ------------------------------------


def _reference(x, w_down, w_up, bn_gamma, bn_beta, bn_mean, bn_var, eps=1e-5):
    h = jnp.where(x >= 0, x, 0.2 * x)
    y = lax.conv_general_dilated(h, w_down, window_strides=(2, 2),
                                 padding=((1, 1), (1, 1)),
                                 dimension_numbers=("NCHW", "OIHW", "NCHW"),
                                 precision=lax.Precision.HIGHEST)
    z = jnp.maximum(y, 0.0)
    w_eq = jnp.transpose(w_up, (1, 0, 2, 3))[:, :, ::-1, ::-1]
    u = lax.conv_general_dilated(z, w_eq, window_strides=(1, 1),
                                 padding=((2, 2), (2, 2)), lhs_dilation=(2, 2),
                                 dimension_numbers=("NCHW", "OIHW", "NCHW"),
                                 precision=lax.Precision.HIGHEST)
    inv_std = 1.0 / jnp.sqrt(bn_var + eps)
    u = u * (bn_gamma * inv_std).reshape(1, -1, 1, 1) \
        + (bn_beta - bn_mean * bn_gamma * inv_std).reshape(1, -1, 1, 1)
    return jnp.concatenate([x, u], axis=1)


# ----------------------------------- main ---------------------------------------------

if __name__ == "__main__":
    key = jax.random.PRNGKey(0)
    ks = jax.random.split(key, 7)

    # innermost block: input_nc defaults to outer_nc. H=W=32 so M = N*(H/2)*(W/2) = 512
    # rows -> two 256-row grid tiles (exercises the tiled/pipelined path).
    N, outer_nc, inner_nc, H, W = 2, 4, 8, 32, 32
    input_nc = outer_nc

    x = jax.random.normal(ks[0], (N, input_nc, H, W), jnp.float32)
    w_down = 0.1 * jax.random.normal(ks[1], (inner_nc, input_nc, 4, 4), jnp.float32)
    w_up = 0.1 * jax.random.normal(ks[2], (inner_nc, outer_nc, 4, 4), jnp.float32)
    bn_gamma = 1.0 + 0.1 * jax.random.normal(ks[3], (outer_nc,), jnp.float32)
    bn_beta = 0.1 * jax.random.normal(ks[4], (outer_nc,), jnp.float32)
    bn_mean = 0.1 * jax.random.normal(ks[5], (outer_nc,), jnp.float32)
    bn_var = jnp.abs(jax.random.normal(ks[6], (outer_nc,), jnp.float32)) + 0.5

    out = jax.jit(unet_innermost_forward)(x, w_down, w_up, bn_gamma, bn_beta,
                                          bn_mean, bn_var)
    out = jax.block_until_ready(out)

    assert out.shape == (N, input_nc + outer_nc, H, W), out.shape
    ref = _reference(x, w_down, w_up, bn_gamma, bn_beta, bn_mean, bn_var)
    # bf16 MXU operands (f32 accumulation) -> slightly looser tolerance than pure f32.
    assert jnp.allclose(out, ref, atol=5e-2, rtol=5e-2), float(jnp.max(jnp.abs(out - ref)))

    print("KERNEL_OK")
</pallas_src>

<mosaic_0001>
module attributes {stable_mosaic.version = 11 : i64} {
  func.func @_matmul_relu_kernel(%arg0: i32, %arg1: memref<256x64xbf16, #tpu.memory_space<vmem>>, %arg2: memref<64x128xbf16, #tpu.memory_space<vmem>>, %arg3: memref<256x128xbf16, #tpu.memory_space<vmem>>) attributes {dimension_semantics = [#tpu.dimension_semantics<parallel>], iteration_bounds = array<i64: 2>, scalar_prefetch = 0 : i64, scratch_operands = 0 : i64, tpu.core_type = #tpu.core_type<tc>, window_params = [{transform_indices = @transform_0, window_bounds = array<i64: 256, 64>}, {pipeline_mode = #tpu.pipeline_mode<synchronous>, transform_indices = @transform_1, window_bounds = array<i64: 64, 128>}, {transform_indices = @transform_2, window_bounds = array<i64: 256, 128>}]} {
    %c0 = arith.constant 0 : index
    %c0_0 = arith.constant 0 : index
    %0 = vector.load %arg1[%c0, %c0_0] : memref<256x64xbf16, #tpu.memory_space<vmem>>, vector<256x64xbf16>
    %c0_1 = arith.constant 0 : index
    %c0_2 = arith.constant 0 : index
    %1 = vector.load %arg2[%c0_1, %c0_2] : memref<64x128xbf16, #tpu.memory_space<vmem>>, vector<64x128xbf16>
    %cst = arith.constant dense<0.000000e+00> : vector<256x128xf32>
    %2 = tpu.matmul %0, %1, %cst {dimension_numbers = #tpu.dot_dimension_numbers<[1], [0], [0], [1], [0, 0, 1, 1], [], []>} : vector<256x64xbf16>, vector<64x128xbf16>, vector<256x128xf32> -> vector<256x128xf32>
    %cst_3 = arith.constant 0.000000e+00 : f32
    %3 = vector.broadcast %cst_3 : f32 to vector<256x128xf32>
    %4 = arith.maximumf %2, %3 : vector<256x128xf32>
    %5 = arith.truncf %4 : vector<256x128xf32> to vector<256x128xbf16>
    %c0_4 = arith.constant 0 : index
    %c0_5 = arith.constant 0 : index
    %6 = vector.load %arg3[%c0_4, %c0_5] : memref<256x128xbf16, #tpu.memory_space<vmem>>, vector<256x128xbf16>
    tpu.vector_store %arg3[%c0_4, %c0_5], %5 {strides = array<i32>} : memref<256x128xbf16, #tpu.memory_space<vmem>>, vector<256x128xbf16>,
    return
  }
  func.func @transform_0(%arg0: i32) -> (i32, i32) {
    %c0_i32 = arith.constant 0 : i32
    %c0_i32_0 = arith.constant 0 : i32
    return %arg0, %c0_i32 : i32, i32
  }
  func.func @transform_1(%arg0: i32) -> (i32, i32) {
    %c0_i32 = arith.constant 0 : i32
    %c0_i32_0 = arith.constant 0 : i32
    %c0_i32_1 = arith.constant 0 : i32
    return %c0_i32, %c0_i32_0 : i32, i32
  }
  func.func @transform_2(%arg0: i32) -> (i32, i32) {
    %c0_i32 = arith.constant 0 : i32
    %c0_i32_0 = arith.constant 0 : i32
    return %arg0, %c0_i32 : i32, i32
  }
}

module attributes {stable_mosaic.version = 11 : i64} {
  func.func @_matmul_shift_kernel(%arg0: i32, %arg1: memref<256x72xbf16, #tpu.memory_space<vmem>>, %arg2: memref<72x128xbf16, #tpu.memory_space<vmem>>, %arg3: memref<1x128xf32, #tpu.memory_space<vmem>>, %arg4: memref<256x128xf32, #tpu.memory_space<vmem>>) attributes {dimension_semantics = [#tpu.dimension_semantics<parallel>], iteration_bounds = array<i64: 2>, scalar_prefetch = 0 : i64, scratch_operands = 0 : i64, tpu.core_type = #tpu.core_type<tc>, window_params = [{transform_indices = @transform_0, window_bounds = array<i64: 256, 72>}, {pipeline_mode = #tpu.pipeline_mode<synchronous>, transform_indices = @transform_1, window_bounds = array<i64: 72, 128>}, {pipeline_mode = #tpu.pipeline_mode<synchronous>, transform_indices = @transform_2, window_bounds = array<i64: 1, 128>}, {transform_indices = @transform_3, window_bounds = array<i64: 256, 128>}]} {
    %c0 = arith.constant 0 : index
    %c0_0 = arith.constant 0 : index
    %0 = vector.load %arg1[%c0, %c0_0] : memref<256x72xbf16, #tpu.memory_space<vmem>>, vector<256x72xbf16>
    %c0_1 = arith.constant 0 : index
    %c0_2 = arith.constant 0 : index
    %1 = vector.load %arg2[%c0_1, %c0_2] : memref<72x128xbf16, #tpu.memory_space<vmem>>, vector<72x128xbf16>
    %cst = arith.constant dense<0.000000e+00> : vector<256x128xf32>
    %2 = tpu.matmul %0, %1, %cst {dimension_numbers = #tpu.dot_dimension_numbers<[1], [0], [0], [1], [0, 0, 1, 1], [], []>} : vector<256x72xbf16>, vector<72x128xbf16>, vector<256x128xf32> -> vector<256x128xf32>
    %c0_3 = arith.constant 0 : index
    %c0_4 = arith.constant 0 : index
    %3 = vector.load %arg3[%c0_3, %c0_4] : memref<1x128xf32, #tpu.memory_space<vmem>>, vector<1x128xf32>
    %4 = vector.broadcast %3 : vector<1x128xf32> to vector<256x128xf32>
    %5 = arith.addf %2, %4 : vector<256x128xf32>
    %c0_5 = arith.constant 0 : index
    %c0_6 = arith.constant 0 : index
    %6 = vector.load %arg4[%c0_5, %c0_6] : memref<256x128xf32, #tpu.memory_space<vmem>>, vector<256x128xf32>
    tpu.vector_store %arg4[%c0_5, %c0_6], %5 {strides = array<i32>} : memref<256x128xf32, #tpu.memory_space<vmem>>, vector<256x128xf32>,
    return
  }
  func.func @transform_0(%arg0: i32) -> (i32, i32) {
    %c0_i32 = arith.constant 0 : i32
    %c0_i32_0 = arith.constant 0 : i32
    return %arg0, %c0_i32 : i32, i32
  }
  func.func @transform_1(%arg0: i32) -> (i32, i32) {
    %c0_i32 = arith.constant 0 : i32
    %c0_i32_0 = arith.constant 0 : i32
    %c0_i32_1 = arith.constant 0 : i32
    return %c0_i32, %c0_i32_0 : i32, i32
  }
  func.func @transform_2(%arg0: i32) -> (i32, i32) {
    %c0_i32 = arith.constant 0 : i32
    %c0_i32_0 = arith.constant 0 : i32
    %c0_i32_1 = arith.constant 0 : i32
    return %c0_i32, %c0_i32_0 : i32, i32
  }
  func.func @transform_3(%arg0: i32) -> (i32, i32) {
    %c0_i32 = arith.constant 0 : i32
    %c0_i32_0 = arith.constant 0 : i32
    return %arg0, %c0_i32 : i32, i32
  }
}

</mosaic_0001>

<llo_original>
// kernel: unet_innermost_forward.2
$region0: #{unet_innermost_forward.2}
  #allocation0 [shape = 'u32[]', space=smem, size = 0x4, offset = 0x4, fixed_abs, tag = 'smem constant byte address 0x4 - core index']
  #allocation1 [shape = 'u32[144,128]{1,0:T(1,128)}', space=vmem, size = 0x12000, scoped, tag = 'internal scratch']
  %s0 = inlined_call_operand.vmem [shape: bf16[512,64], index: 0, kind: input, shape index: {}]
  %s1 = inlined_call_operand.vmem [shape: bf16[64,128], index: 1, kind: input, shape index: {}]
  %s2 = inlined_call_operand.vmem [shape: bf16[512,128], index: 2, kind: output, shape index: {}]
  %s3 = sld [smem:[#allocation0]]
  $region41: #{unet_innermost_forward.2} parent=0
    _
  %s5 = ssub.s32 1, %s3
  %s6 = scalar_select 0, %s5, %s3
  loop: start=0, step=1, limit=4
  $region2: #{unet_innermost_forward.2} parent=0 // loop_pre_header
    _
  $region3: #{unet_innermost_forward.2} parent=0 // loop_header
    %s8 = sphi 0, %s12
    %p9 = scmp.ge.s32.totalorder %s8, 4
    %s18 = sphi 0, %s20
    %s21 = sphi 0, %s18
    %s22 = sphi 0, %s21
    %s38 = sphi 0, %s22
    %s42 = sphi 0, %s42
    %s44 = sphi 0, %s42
    %s45 = sphi 0, %s44
    %s59 = sphi 0, %s45
    %s65 = sphi 0, %s67
    %s68 = sphi 0, %s65
    %s69 = sphi 0, %s68
    %s85 = sphi 0, %s69
  $region4: #{unet_innermost_forward.2} parent=0 // loop_header_branch
    %11 = sbr.rel (%p9) target = $region8
  $region5: #{unet_innermost_forward.2} parent=0 // loop_body
    %s13 = ssub.s32 %s8, 1
    %s14 = ssub.s32 %s8, 2
    %s15 = sadd.s32 %s8, 1
    %s16 = ssub.s32 %s8, %s15
    %p17 = scmp.eq.s32.totalorder %s16, 0
    %s19 = sadd.s32 %s18, 1
    %s20 = scalar_select %p17, %s18, %s19
    %p23 = pneg %p17
    %p24 = scmp.eq.s32.totalorder %s8, 1
    %p25 = por %p23, %p24
    %p26 = scmp.ne.s32.totalorder %s18, %s21
    %p27 = scmp.eq.s32.totalorder %s8, 0
    %p28 = por %p26, %p27
    %p29 = scmp.ne.s32.totalorder %s18, %s21
    %p30 = scmp.eq.s32.totalorder %s13, 1
    %p31 = por %p29, %p30
    %p32 = scmp.ne.s32.totalorder %s21, %s22
    %p33 = scmp.eq.s32.totalorder %s13, 0
    %p34 = por %p32, %p33
    %p35 = scmp.ne.s32.totalorder %s21, %s22
    %p36 = scmp.eq.s32.totalorder %s14, 1
    %p37 = por %p35, %p36
    %p39 = scmp.ne.s32.totalorder %s22, %s38
    %p40 = scmp.eq.s32.totalorder %s14, 0
    %p41 = por %p39, %p40
    %s43 = sadd.s32 %s42, 1
    %p46 = scmp.eq.s32.totalorder %s8, 1
    %p47 = scmp.ne.s32.totalorder %s42, %s44
    %p48 = scmp.eq.s32.totalorder %s8, 0
    %p49 = por %p47, %p48
    %p50 = scmp.ne.s32.totalorder %s42, %s44
    %p51 = scmp.eq.s32.totalorder %s13, 1
    %p52 = por %p50, %p51
    %p53 = scmp.ne.s32.totalorder %s44, %s45
    %p54 = scmp.eq.s32.totalorder %s13, 0
    %p55 = por %p53, %p54
    %p56 = scmp.ne.s32.totalorder %s44, %s45
    %p57 = scmp.eq.s32.totalorder %s14, 1
    %p58 = por %p56, %p57
    %p60 = scmp.ne.s32.totalorder %s45, %s59
    %p61 = scmp.eq.s32.totalorder %s14, 0
    %p62 = por %p60, %p61
    %s63 = ssub.s32 %s8, %s15
    %p64 = scmp.eq.s32.totalorder %s63, 0
    %s66 = sadd.s32 %s65, 1
    %s67 = scalar_select %p64, %s65, %s66
    %p70 = pneg %p64
    %p71 = scmp.eq.s32.totalorder %s8, 1
    %p72 = por %p70, %p71
    %p73 = scmp.ne.s32.totalorder %s65, %s68
    %p74 = scmp.eq.s32.totalorder %s8, 0
    %p75 = por %p73, %p74
    %p76 = scmp.ne.s32.totalorder %s65, %s68
    %p77 = scmp.eq.s32.totalorder %s13, 1
    %p78 = por %p76, %p77
    %p79 = scmp.ne.s32.totalorder %s68, %s69
    %p80 = scmp.eq.s32.totalorder %s13, 0
    %p81 = por %p79, %p80
    %p82 = scmp.ne.s32.totalorder %s68, %s69
    %p83 = scmp.eq.s32.totalorder %s14, 1
    %p84 = por %p82, %p83
    %p86 = scmp.ne.s32.totalorder %s69, %s85
    %p87 = scmp.eq.s32.totalorder %s14, 0
    %p88 = por %p86, %p87
    %p89 = scmp.le.s32.totalorder 1, %s8
    %p90 = scmp.lt.s32.totalorder %s8, 3
    %p91 = pnand %p89, %p90
    %p92 = pneg %p91
    // Predicated region
    $region9: #{unet_innermost_forward.2} parent=5 // pred_check
      _
    $region10: #{unet_innermost_forward.2} parent=5 // pred_check_branch
      %94 = sbr.rel (%p91) target = $region12
    $region11: #{unet_innermost_forward.2} parent=5 // pred_region
      %s95 = ssub.s32 %s8, 1
      // Predicated region
      $region13: #{unet_innermost_forward.2} parent=11 // pred_check
        %p96 = pneg %p55
      $region14: #{unet_innermost_forward.2} parent=11 // pred_check_branch
        %98 = sbr.rel (%p96) target = $region16
      $region15: #{unet_innermost_forward.2} parent=11 // pred_region
        _
      $region16: #{unet_innermost_forward.2} parent=11 // pred_fallthru
        _
    $region12: #{unet_innermost_forward.2} parent=5 // pred_fallthru
      _
    %p99 = scmp.lt.s32.totalorder %s8, 2
    // Predicated region
    $region17: #{unet_innermost_forward.2} parent=5 // pred_check
      %p100 = pneg %p99
    $region18: #{unet_innermost_forward.2} parent=5 // pred_check_branch
      %102 = sbr.rel (%p100) target = $region20
    $region19: #{unet_innermost_forward.2} parent=5 // pred_region
      // Predicated region
      $region21: #{unet_innermost_forward.2} parent=19 // pred_check
        %p103 = pneg %p28
      $region22: #{unet_innermost_forward.2} parent=19 // pred_check_branch
        %105 = sbr.rel (%p103) target = $region24
      $region23: #{unet_innermost_forward.2} parent=19 // pred_region
        %s106 = smul.u32 32, %s8
        %p107 = scmp.lt.s32.totalorder %s106, 63
        %s108 = scalar_select %p107, %s106, 63
        %s109 = smul.addr %s108, 4
        %s110 = scalar_lea.vmem %s0, %s109
        %s111 = smul.u32 32, %s8
      $region24: #{unet_innermost_forward.2} parent=19 // pred_fallthru
        _
    $region20: #{unet_innermost_forward.2} parent=5 // pred_fallthru
      _
    %p112 = scmp.le.s32.totalorder 1, %s8
    %p113 = scmp.lt.s32.totalorder %s8, 3
    %p114 = pnand %p112, %p113
    %p115 = pneg %p114
    // Predicated region
    $region25: #{unet_innermost_forward.2} parent=5 // pred_check
      _
    $region26: #{unet_innermost_forward.2} parent=5 // pred_check_branch
      %117 = sbr.rel (%p114) target = $region28
    $region27: #{unet_innermost_forward.2} parent=5 // pred_region
      %s118 = ssub.s32 %s8, 1
      %s119 = smul.u32 32, %s13
      %p120 = scmp.lt.s32.totalorder %s119, 63
      %s121 = scalar_select %p120, %s119, 63
      %s122 = smul.addr %s121, 4
      %s123 = scalar_lea.vmem %s0, %s122
      %p124 = pneg %p34
      %p125 = pneg %p31
      %p126 = pneg %p55
      %p127 = pneg %p52
      %p128 = pneg %p81
      %p129 = pneg %p78
      %s130 = smul.u32 32, %s13
      %p131 = scmp.lt.s32.totalorder %s130, 63
      %s132 = scalar_select %p131, %s130, 63
      %s133 = smul.addr %s132, 4
      %s134 = scalar_lea.vmem %s2, %s133
      %s135 = smul.u32 32, %s13
      %p136 = scmp.lt.s32.totalorder %s135, 63
      %s137 = scalar_select %p136, %s135, 63
      %s138 = smul.addr %s137, 4
      %s139 = scalar_lea.vmem %s0, %s138
      %s140 = smul.u32 32, %s13
      %s141 = smul.u32 32, %s13
      %p142 = scmp.lt.s32.totalorder %s141, 63
      %s143 = scalar_select %p142, %s141, 63
      %s144 = smul.addr %s143, 4
      %s145 = scalar_lea.vmem %s2, %s144
      %s146 = smul.u32 32, %s13
      %v148 = vld [vmem:[%s139] sm:$0xf]
      %v149 = vld [vmem:[%s139 + $0x4] sm:$0xf]
      %v150 = vld [vmem:[%s139 + $0x8] sm:$0xf]
      %v151 = vld [vmem:[%s139 + $0xc] sm:$0xf]
      %v152 = vld [vmem:[%s139 + $0x10] sm:$0xf]
      %v153 = vld [vmem:[%s139 + $0x14] sm:$0xf]
      %v154 = vld [vmem:[%s139 + $0x18] sm:$0xf]
      %v155 = vld [vmem:[%s139 + $0x1c] sm:$0xf]
      %v156 = vld [vmem:[%s139 + $0x20] sm:$0xf]
      %v157 = vld [vmem:[%s139 + $0x24] sm:$0xf]
      %v158 = vld [vmem:[%s139 + $0x28] sm:$0xf]
      %v159 = vld [vmem:[%s139 + $0x2c] sm:$0xf]
      %v160 = vld [vmem:[%s139 + $0x30] sm:$0xf]
      %v161 = vld [vmem:[%s139 + $0x34] sm:$0xf]
      %v162 = vld [vmem:[%s139 + $0x38] sm:$0xf]
      %v163 = vld [vmem:[%s139 + $0x3c] sm:$0xf]
      %v164 = vld [vmem:[%s139 + $0x40] sm:$0xf]
      %v165 = vld [vmem:[%s139 + $0x44] sm:$0xf]
      %v166 = vld [vmem:[%s139 + $0x48] sm:$0xf]
      %v167 = vld [vmem:[%s139 + $0x4c] sm:$0xf]
      %v168 = vld [vmem:[%s139 + $0x50] sm:$0xf]
      %v169 = vld [vmem:[%s139 + $0x54] sm:$0xf]
      %v170 = vld [vmem:[%s139 + $0x58] sm:$0xf]
      %v171 = vld [vmem:[%s139 + $0x5c] sm:$0xf]
      %v172 = vld [vmem:[%s139 + $0x60] sm:$0xf]
      %v173 = vld [vmem:[%s139 + $0x64] sm:$0xf]
      %v174 = vld [vmem:[%s139 + $0x68] sm:$0xf]
      %v175 = vld [vmem:[%s139 + $0x6c] sm:$0xf]
      %v176 = vld [vmem:[%s139 + $0x70] sm:$0xf]
      %v177 = vld [vmem:[%s139 + $0x74] sm:$0xf]
      %v178 = vld [vmem:[%s139 + $0x78] sm:$0xf]
      %v179 = vld [vmem:[%s139 + $0x7c] sm:$0xf]
      %v180 = vld [vmem:[%s1] sm:$0xf]
      %v181 = vld [vmem:[%s1 + $0x4] sm:$0xf]
      %v182 = vld [vmem:[%s1 + $0x8] sm:$0xf]
      %v183 = vld [vmem:[%s1 + $0xc] sm:$0xf]
      %v184 = vld [vmem:[%s1 + $0x10] sm:$0xf]
      %v185 = vld [vmem:[%s1 + $0x14] sm:$0xf]
      %v186 = vld [vmem:[%s1 + $0x18] sm:$0xf]
      %v187 = vld [vmem:[%s1 + $0x1c] sm:$0xf]
      %v220 = vunpack.c.l.b16 %v148
      %v221 = vunpack.c.l.b16 %v149
      %v222 = vunpack.c.l.b16 %v150
      %v223 = vunpack.c.l.b16 %v151
      %v224 = vunpack.c.l.b16 %v152
      %v225 = vunpack.c.l.b16 %v153
      %v226 = vunpack.c.l.b16 %v154
      %v227 = vunpack.c.l.b16 %v155
      %v228 = vunpack.c.l.b16 %v156
      %v229 = vunpack.c.l.b16 %v157
      %v230 = vunpack.c.l.b16 %v158
      %v231 = vunpack.c.l.b16 %v159
      %v232 = vunpack.c.l.b16 %v160
      %v233 = vunpack.c.l.b16 %v161
      %v234 = vunpack.c.l.b16 %v162
      %v235 = vunpack.c.l.b16 %v163
      %v236 = vunpack.c.l.b16 %v164
      %v237 = vunpack.c.l.b16 %v165
      %v238 = vunpack.c.l.b16 %v166
      %v239 = vunpack.c.l.b16 %v167
      %v240 = vunpack.c.l.b16 %v168
      %v241 = vunpack.c.l.b16 %v169
      %v242 = vunpack.c.l.b16 %v170
      %v243 = vunpack.c.l.b16 %v171
      %v244 = vunpack.c.l.b16 %v172
      %v245 = vunpack.c.l.b16 %v173
      %v246 = vunpack.c.l.b16 %v174
      %v247 = vunpack.c.l.b16 %v175
      %v248 = vunpack.c.l.b16 %v176
      %v249 = vunpack.c.l.b16 %v177
      %v250 = vunpack.c.l.b16 %v178
      %v251 = vunpack.c.l.b16 %v179
      %v252 = vpack.c.b16 %v221, %v220
      %v253 = vpack.c.b16 %v223, %v222
      %v254 = vpack.c.b16 %v225, %v224
      %v255 = vpack.c.b16 %v227, %v226
      %v256 = vpack.c.b16 %v229, %v228
      %v257 = vpack.c.b16 %v231, %v230
      %v258 = vpack.c.b16 %v233, %v232
      %v259 = vpack.c.b16 %v235, %v234
      %v260 = vpack.c.b16 %v237, %v236
      %v261 = vpack.c.b16 %v239, %v238
      %v262 = vpack.c.b16 %v241, %v240
      %v263 = vpack.c.b16 %v243, %v242
      %v264 = vpack.c.b16 %v245, %v244
      %v265 = vpack.c.b16 %v247, %v246
      %v266 = vpack.c.b16 %v249, %v248
      %v267 = vpack.c.b16 %v251, %v250
      %v276 = vunpack.c.l.b16 %v180
      %v277 = vunpack.c.l.b16 %v181
      %v278 = vunpack.c.l.b16 %v182
      %v279 = vunpack.c.l.b16 %v183
      %v280 = vunpack.c.l.b16 %v184
      %v281 = vunpack.c.l.b16 %v185
      %v282 = vunpack.c.l.b16 %v186
      %v283 = vunpack.c.l.b16 %v187
      %v284 = vpack.c.b16 %v277, %v276
      %v285 = vpack.c.b16 %v279, %v278
      %v286 = vpack.c.b16 %v281, %v280
      %v287 = vpack.c.b16 %v283, %v282
      %vm292 = vcmask 523264
      %v294 = vsel %vm292, %v252, 0
      %v297 = vsel %vm292, %v253, 0
      %v300 = vsel %vm292, %v254, 0
      %v303 = vsel %vm292, %v255, 0
      %v306 = vsel %vm292, %v256, 0
      %v309 = vsel %vm292, %v257, 0
      %v312 = vsel %vm292, %v258, 0
      %v315 = vsel %vm292, %v259, 0
      %v318 = vsel %vm292, %v260, 0
      %v321 = vsel %vm292, %v261, 0
      %v324 = vsel %vm292, %v262, 0
      %v327 = vsel %vm292, %v263, 0
      %v330 = vsel %vm292, %v264, 0
      %v333 = vsel %vm292, %v265, 0
      %v336 = vsel %vm292, %v266, 0
      %v339 = vsel %vm292, %v267, 0
      %341 = vmatprep.subr.bf16.mxu0 0
      %342 = vmatpush1.bf16.msra.mxu0 %v284
      %343 = vmatprep.subr.bf16.mxu0 0
      %344 = vmatpush1.bf16.msra.mxu0 %v285
      %345 = vmatprep.subr.bf16.mxu0 0
      %346 = vmatpush1.bf16.msra.mxu0 %v286
      %347 = vmatprep.subr.bf16.mxu0 0
      %348 = vmatpush1.bf16.msra.mxu0 %v287
      %349 = vmatprep.subr.bf16.mxu0 0
      %350 = vmatpush1.bf16.msra.mxu0 0
      %351 = vmatprep.subr.bf16.mxu0 0
      %352 = vmatpush1.bf16.msra.mxu0 0
      %353 = vmatprep.subr.bf16.mxu0 0
      %354 = vmatpush1.bf16.msra.mxu0 0
      %355 = vmatprep.subr.bf16.mxu0 0
      %356 = vmatpush1.bf16.msra.mxu0 0
      %357 = vmatprep.subr.bf16.mxu0 0
      %358 = vmatpush1.bf16.msra.mxu0 0
      %359 = vmatprep.subr.bf16.mxu0 0
      %360 = vmatpush1.bf16.msra.mxu0 0
      %361 = vmatprep.subr.bf16.mxu0 0
      %362 = vmatpush1.bf16.msra.mxu0 0
      %363 = vmatprep.subr.bf16.mxu0 0
      %364 = vmatpush1.bf16.msra.mxu0 0
      %365 = vmatprep.subr.bf16.mxu0 0
      %366 = vmatpush1.bf16.msra.mxu0 0
      %367 = vmatprep.subr.bf16.mxu0 0
      %368 = vmatpush1.bf16.msra.mxu0 0
      %369 = vmatprep.subr.bf16.mxu0 0
      %370 = vmatpush1.bf16.msra.mxu0 0
      %371 = vmatprep.subr.bf16.mxu0 0
      %372 = vmatpush1.bf16.msra.mxu0 0
      %373 = vmatprep.mubr.bf16.mxu0 0
      %374 = vmatmul.mubr.bf16.gmra.mrb[0].mxu0 %v294
      %v375 = vpop.f32.mrb[0].mxu0
      %v376 = vadd.f32 0.0, %v375
      %v377 = vpop.f32.mrb[0].mxu0
      %v378 = vpop.f32.mrb[0].mxu0
      %v379 = vadd.f32 0.0, %v378
      %v380 = vpop.f32.mrb[0].mxu0
      %381 = vmatprep.mubr.bf16.mxu0 0
      %382 = vmatmul.mubr.bf16.gmra.mrb[0].mxu0 %v297
      %v383 = vpop.f32.mrb[0].mxu0
      %v384 = vadd.f32 0.0, %v383
      %v385 = vpop.f32.mrb[0].mxu0
      %v386 = vpop.f32.mrb[0].mxu0
      %v387 = vadd.f32 0.0, %v386
      %v388 = vpop.f32.mrb[0].mxu0
      %389 = vmatprep.mubr.bf16.mxu0 0
      %390 = vmatmul.mubr.bf16.gmra.mrb[0].mxu0 %v300
      %v391 = vpop.f32.mrb[0].mxu0
      %v392 = vadd.f32 0.0, %v391
      %v393 = vpop.f32.mrb[0].mxu0
      %v394 = vpop.f32.mrb[0].mxu0
      %v395 = vadd.f32 0.0, %v394
      %v396 = vpop.f32.mrb[0].mxu0
      %397 = vmatprep.mubr.bf16.mxu0 0
      %398 = vmatmul.mubr.bf16.gmra.mrb[0].mxu0 %v303
      %v399 = vpop.f32.mrb[0].mxu0
      %v400 = vadd.f32 0.0, %v399
      %v401 = vpop.f32.mrb[0].mxu0
      %v402 = vpop.f32.mrb[0].mxu0
      %v403 = vadd.f32 0.0, %v402
      %v404 = vpop.f32.mrb[0].mxu0
      %405 = vmatprep.mubr.bf16.mxu0 0
      %406 = vmatmul.mubr.bf16.gmra.mrb[0].mxu0 %v306
      %v407 = vpop.f32.mrb[0].mxu0
      %v408 = vadd.f32 0.0, %v407
      %v409 = vpop.f32.mrb[0].mxu0
      %v410 = vpop.f32.mrb[0].mxu0
      %v411 = vadd.f32 0.0, %v410
      %v412 = vpop.f32.mrb[0].mxu0
      %413 = vmatprep.mubr.bf16.mxu0 0
      %414 = vmatmul.mubr.bf16.gmra.mrb[0].mxu0 %v309
      %v415 = vpop.f32.mrb[0].mxu0
      %v416 = vadd.f32 0.0, %v415
      %v417 = vpop.f32.mrb[0].mxu0
      %v418 = vpop.f32.mrb[0].mxu0
      %v419 = vadd.f32 0.0, %v418
      %v420 = vpop.f32.mrb[0].mxu0
      %421 = vmatprep.mubr.bf16.mxu0 0
      %422 = vmatmul.mubr.bf16.gmra.mrb[0].mxu0 %v312
      %v423 = vpop.f32.mrb[0].mxu0
      %v424 = vadd.f32 0.0, %v423
      %v425 = vpop.f32.mrb[0].mxu0
      %v426 = vpop.f32.mrb[0].mxu0
      %v427 = vadd.f32 0.0, %v426
      %v428 = vpop.f32.mrb[0].mxu0
      %429 = vmatprep.mubr.bf16.mxu0 0
      %430 = vmatmul.mubr.bf16.gmra.mrb[0].mxu0 %v315
      %v431 = vpop.f32.mrb[0].mxu0
      %v432 = vadd.f32 0.0, %v431
      %v433 = vpop.f32.mrb[0].mxu0
      %v434 = vpop.f32.mrb[0].mxu0
      %v435 = vadd.f32 0.0, %v434
      %v436 = vpop.f32.mrb[0].mxu0
      %437 = vmatprep.mubr.bf16.mxu0 0
      %438 = vmatmul.mubr.bf16.gmra.mrb[0].mxu0 %v318
      %v439 = vpop.f32.mrb[0].mxu0
      %v440 = vadd.f32 0.0, %v439
      %v441 = vpop.f32.mrb[0].mxu0
      %v442 = vpop.f32.mrb[0].mxu0
      %v443 = vadd.f32 0.0, %v442
      %v444 = vpop.f32.mrb[0].mxu0
      %445 = vmatprep.mubr.bf16.mxu0 0
      %446 = vmatmul.mubr.bf16.gmra.mrb[0].mxu0 %v321
      %v447 = vpop.f32.mrb[0].mxu0
      %v448 = vadd.f32 0.0, %v447
      %v449 = vpop.f32.mrb[0].mxu0
      %v450 = vpop.f32.mrb[0].mxu0
      %v451 = vadd.f32 0.0, %v450
      %v452 = vpop.f32.mrb[0].mxu0
      %453 = vmatprep.mubr.bf16.mxu0 0
      %454 = vmatmul.mubr.bf16.gmra.mrb[0].mxu0 %v324
      %v455 = vpop.f32.mrb[0].mxu0
      %v456 = vadd.f32 0.0, %v455
      %v457 = vpop.f32.mrb[0].mxu0
      %v458 = vpop.f32.mrb[0].mxu0
      %v459 = vadd.f32 0.0, %v458
      %v460 = vpop.f32.mrb[0].mxu0
      %461 = vmatprep.mubr.bf16.mxu0 0
      %462 = vmatmul.mubr.bf16.gmra.mrb[0].mxu0 %v327
      %v463 = vpop.f32.mrb[0].mxu0
      %v464 = vadd.f32 0.0, %v463
      %v465 = vpop.f32.mrb[0].mxu0
      %v466 = vpop.f32.mrb[0].mxu0
      %v467 = vadd.f32 0.0, %v466
      %v468 = vpop.f32.mrb[0].mxu0
      %469 = vmatprep.mubr.bf16.mxu0 0
      %470 = vmatmul.mubr.bf16.gmra.mrb[0].mxu0 %v330
      %v471 = vpop.f32.mrb[0].mxu0
      %v472 = vadd.f32 0.0, %v471
      %v473 = vpop.f32.mrb[0].mxu0
      %v474 = vpop.f32.mrb[0].mxu0
      %v475 = vadd.f32 0.0, %v474
      %v476 = vpop.f32.mrb[0].mxu0
      %477 = vmatprep.mubr.bf16.mxu0 0
      %478 = vmatmul.mubr.bf16.gmra.mrb[0].mxu0 %v333
      %v479 = vpop.f32.mrb[0].mxu0
      %v480 = vadd.f32 0.0, %v479
      %v481 = vpop.f32.mrb[0].mxu0
      %v482 = vpop.f32.mrb[0].mxu0
      %v483 = vadd.f32 0.0, %v482
      %v484 = vpop.f32.mrb[0].mxu0
      %485 = vmatprep.mubr.bf16.mxu0 0
      %486 = vmatmul.mubr.bf16.gmra.mrb[0].mxu0 %v336
      %v487 = vpop.f32.mrb[0].mxu0
      %v488 = vadd.f32 0.0, %v487
      %v489 = vpop.f32.mrb[0].mxu0
      %v490 = vpop.f32.mrb[0].mxu0
      %v491 = vadd.f32 0.0, %v490
      %v492 = vpop.f32.mrb[0].mxu0
      %493 = vmatprep.mubr.bf16.mxu0 0
      %494 = vmatmul.mubr.bf16.gmra.mrb[0].mxu0 %v339
      %v495 = vpop.f32.mrb[0].mxu0
      %v496 = vadd.f32 0.0, %v495
      %v497 = vpop.f32.mrb[0].mxu0
      %v498 = vpop.f32.mrb[0].mxu0
      %v499 = vadd.f32 0.0, %v498
      %v500 = vpop.f32.mrb[0].mxu0
      %501 = vdwg.mxu0
      %v502 = vmax.f32 %v376, 0.0
      %v503 = vmax.f32 %v379, 0.0
      %v504 = vmax.f32 %v384, 0.0
      %v505 = vmax.f32 %v387, 0.0
      %v506 = vmax.f32 %v392, 0.0
      %v507 = vmax.f32 %v395, 0.0
      %v508 = vmax.f32 %v400, 0.0
      %v509 = vmax.f32 %v403, 0.0
      %v510 = vmax.f32 %v408, 0.0
      %v511 = vmax.f32 %v411, 0.0
      %v512 = vmax.f32 %v416, 0.0
      %v513 = vmax.f32 %v419, 0.0
      %v514 = vmax.f32 %v424, 0.0
      %v515 = vmax.f32 %v427, 0.0
      %v516 = vmax.f32 %v432, 0.0
      %v517 = vmax.f32 %v435, 0.0
      %v518 = vmax.f32 %v440, 0.0
      %v519 = vmax.f32 %v443, 0.0
      %v520 = vmax.f32 %v448, 0.0
      %v521 = vmax.f32 %v451, 0.0
      %v522 = vmax.f32 %v456, 0.0
      %v523 = vmax.f32 %v459, 0.0
      %v524 = vmax.f32 %v464, 0.0
      %v525 = vmax.f32 %v467, 0.0
      %v526 = vmax.f32 %v472, 0.0
      %v527 = vmax.f32 %v475, 0.0
      %v528 = vmax.f32 %v480, 0.0
      %v529 = vmax.f32 %v483, 0.0
      %v530 = vmax.f32 %v488, 0.0
      %v531 = vmax.f32 %v491, 0.0
      %v532 = vmax.f32 %v496, 0.0
      %v533 = vmax.f32 %v499, 0.0
      %v534 = vpack.c.bf16 %v503, %v502
      %v535 = vpack.c.bf16 %v505, %v504
      %v536 = vpack.c.bf16 %v507, %v506
      %v537 = vpack.c.bf16 %v509, %v508
      %v538 = vpack.c.bf16 %v511, %v510
      %v539 = vpack.c.bf16 %v513, %v512
      %v540 = vpack.c.bf16 %v515, %v514
      %v541 = vpack.c.bf16 %v517, %v516
      %v542 = vpack.c.bf16 %v519, %v518
      %v543 = vpack.c.bf16 %v521, %v520
      %v544 = vpack.c.bf16 %v523, %v522
      %v545 = vpack.c.bf16 %v525, %v524
      %v546 = vpack.c.bf16 %v527, %v526
      %v547 = vpack.c.bf16 %v529, %v528
      %v548 = vpack.c.bf16 %v531, %v530
      %v549 = vpack.c.bf16 %v533, %v532
      %v566 = vunpack.c.l.b16 %v534
      %v567 = vunpack.c.h.b16 %v534
      %v568 = vunpack.c.l.b16 %v535
      %v569 = vunpack.c.h.b16 %v535
      %v570 = vunpack.c.l.b16 %v536
      %v571 = vunpack.c.h.b16 %v536
      %v572 = vunpack.c.l.b16 %v537
      %v573 = vunpack.c.h.b16 %v537
      %v574 = vunpack.c.l.b16 %v538
      %v575 = vunpack.c.h.b16 %v538
      %v576 = vunpack.c.l.b16 %v539
      %v577 = vunpack.c.h.b16 %v539
      %v578 = vunpack.c.l.b16 %v540
      %v579 = vunpack.c.h.b16 %v540
      %v580 = vunpack.c.l.b16 %v541
      %v581 = vunpack.c.h.b16 %v541
      %v582 = vunpack.c.l.b16 %v542
      %v583 = vunpack.c.h.b16 %v542
      %v584 = vunpack.c.l.b16 %v543
      %v585 = vunpack.c.h.b16 %v543
      %v586 = vunpack.c.l.b16 %v544
      %v587 = vunpack.c.h.b16 %v544
      %v588 = vunpack.c.l.b16 %v545
      %v589 = vunpack.c.h.b16 %v545
      %v590 = vunpack.c.l.b16 %v546
      %v591 = vunpack.c.h.b16 %v546
      %v592 = vunpack.c.l.b16 %v547
      %v593 = vunpack.c.h.b16 %v547
      %v594 = vunpack.c.l.b16 %v548
      %v595 = vunpack.c.h.b16 %v548
      %v596 = vunpack.c.l.b16 %v549
      %v597 = vunpack.c.h.b16 %v549
      %v598 = vpack.c.b16 %v566, %v566
      %v599 = vpack.c.b16 %v567, %v567
      %v600 = vpack.c.b16 %v568, %v568
      %v601 = vpack.c.b16 %v569, %v569
      %v602 = vpack.c.b16 %v570, %v570
      %v603 = vpack.c.b16 %v571, %v571
      %v604 = vpack.c.b16 %v572, %v572
      %v605 = vpack.c.b16 %v573, %v573
      %v606 = vpack.c.b16 %v574, %v574
      %v607 = vpack.c.b16 %v575, %v575
      %v608 = vpack.c.b16 %v576, %v576
      %v609 = vpack.c.b16 %v577, %v577
      %v610 = vpack.c.b16 %v578, %v578
      %v611 = vpack.c.b16 %v579, %v579
      %v612 = vpack.c.b16 %v580, %v580
      %v613 = vpack.c.b16 %v581, %v581
      %v614 = vpack.c.b16 %v582, %v582
      %v615 = vpack.c.b16 %v583, %v583
      %v616 = vpack.c.b16 %v584, %v584
      %v617 = vpack.c.b16 %v585, %v585
      %v618 = vpack.c.b16 %v586, %v586
      %v619 = vpack.c.b16 %v587, %v587
      %v620 = vpack.c.b16 %v588, %v588
      %v621 = vpack.c.b16 %v589, %v589
      %v622 = vpack.c.b16 %v590, %v590
      %v623 = vpack.c.b16 %v591, %v591
      %v624 = vpack.c.b16 %v592, %v592
      %v625 = vpack.c.b16 %v593, %v593
      %v626 = vpack.c.b16 %v594, %v594
      %v627 = vpack.c.b16 %v595, %v595
      %v628 = vpack.c.b16 %v596, %v596
      %v629 = vpack.c.b16 %v597, %v597
      %662 = vst [vmem:[%s145] sm:$0xf] %v598
      %663 = vst [vmem:[%s145 + $0x4] sm:$0xf] %v599
      %664 = vst [vmem:[%s145 + $0x8] sm:$0xf] %v600
      %665 = vst [vmem:[%s145 + $0xc] sm:$0xf] %v601
      %666 = vst [vmem:[%s145 + $0x10] sm:$0xf] %v602
      %667 = vst [vmem:[%s145 + $0x14] sm:$0xf] %v603
      %668 = vst [vmem:[%s145 + $0x18] sm:$0xf] %v604
      %669 = vst [vmem:[%s145 + $0x1c] sm:$0xf] %v605
      %670 = vst [vmem:[%s145 + $0x20] sm:$0xf] %v606
      %671 = vst [vmem:[%s145 + $0x24] sm:$0xf] %v607
      %672 = vst [vmem:[%s145 + $0x28] sm:$0xf] %v608
      %673 = vst [vmem:[%s145 + $0x2c] sm:$0xf] %v609
      %674 = vst [vmem:[%s145 + $0x30] sm:$0xf] %v610
      %675 = vst [vmem:[%s145 + $0x34] sm:$0xf] %v611
      %676 = vst [vmem:[%s145 + $0x38] sm:$0xf] %v612
      %677 = vst [vmem:[%s145 + $0x3c] sm:$0xf] %v613
      %678 = vst [vmem:[%s145 + $0x40] sm:$0xf] %v614
      %679 = vst [vmem:[%s145 + $0x44] sm:$0xf] %v615
      %680 = vst [vmem:[%s145 + $0x48] sm:$0xf] %v616
      %681 = vst [vmem:[%s145 + $0x4c] sm:$0xf] %v617
      %682 = vst [vmem:[%s145 + $0x50] sm:$0xf] %v618
      %683 = vst [vmem:[%s145 + $0x54] sm:$0xf] %v619
      %684 = vst [vmem:[%s145 + $0x58] sm:$0xf] %v620
      %685 = vst [vmem:[%s145 + $0x5c] sm:$0xf] %v621
      %686 = vst [vmem:[%s145 + $0x60] sm:$0xf] %v622
      %687 = vst [vmem:[%s145 + $0x64] sm:$0xf] %v623
      %688 = vst [vmem:[%s145 + $0x68] sm:$0xf] %v624
      %689 = vst [vmem:[%s145 + $0x6c] sm:$0xf] %v625
      %690 = vst [vmem:[%s145 + $0x70] sm:$0xf] %v626
      %691 = vst [vmem:[%s145 + $0x74] sm:$0xf] %v627
      %692 = vst [vmem:[%s145 + $0x78] sm:$0xf] %v628
      %693 = vst [vmem:[%s145 + $0x7c] sm:$0xf] %v629
      %s694 = smul.u32 32, %s13
      %p695 = scmp.lt.s32.totalorder %s694, 63
      %s696 = scalar_select %p695, %s694, 63
      %s697 = smul.addr %s696, 4
      %s698 = scalar_lea.vmem %s2, %s697
      // Predicated region
      $region29: #{unet_innermost_forward.2} parent=27 // pred_check
        %p699 = pneg %p78
      $region30: #{unet_innermost_forward.2} parent=27 // pred_check_branch
        %701 = sbr.rel (%p699) target = $region32
      $region31: #{unet_innermost_forward.2} parent=27 // pred_region
        %s702 = smul.u32 32, %s13
      $region32: #{unet_innermost_forward.2} parent=27 // pred_fallthru
        _
    $region28: #{unet_innermost_forward.2} parent=5 // pred_fallthru
      _
    %p703 = scmp.le.s32.totalorder 2, %s8
    // Predicated region
    $region33: #{unet_innermost_forward.2} parent=5 // pred_check
      %p704 = pneg %p703
    $region34: #{unet_innermost_forward.2} parent=5 // pred_check_branch
      %706 = sbr.rel (%p704) target = $region36
    $region35: #{unet_innermost_forward.2} parent=5 // pred_region
      %s707 = ssub.s32 %s8, 2
      // Predicated region
      $region37: #{unet_innermost_forward.2} parent=35 // pred_check
        %p708 = pneg %p84
      $region38: #{unet_innermost_forward.2} parent=35 // pred_check_branch
        %710 = sbr.rel (%p708) target = $region40
      $region39: #{unet_innermost_forward.2} parent=35 // pred_region
        %s711 = smul.u32 32, %s14
        %p712 = scmp.lt.s32.totalorder %s711, 63
        %s713 = scalar_select %p712, %s711, 63
        %s714 = smul.addr %s713, 4
        %s715 = scalar_lea.vmem %s2, %s714
      $region40: #{unet_innermost_forward.2} parent=35 // pred_fallthru
        _
    $region36: #{unet_innermost_forward.2} parent=5 // pred_fallthru
      _
  $region6: #{unet_innermost_forward.2} parent=0 // loop_footer
    %s12 = sadd.s32 1, %s8
  $region7: #{unet_innermost_forward.2} parent=0 // loop_footer_branch
    %7 = sbr.rel target = $region3
  $region8: #{unet_innermost_forward.2} parent=0 // loop_exit
    _

// kernel: tile.13
$region0: #{tile.13}
  #allocation0 [shape = 's32[1]{0}', space=sflag, size = 0x4, scoped, tag = 'scoped memory for tile.13']
  %s0 = inlined_call_operand.vmem [shape: f32[4], index: 0, kind: input, shape index: {}]
  %s1 = inlined_call_operand.vmem [shape: f32[4,4], index: 1, kind: output, shape index: {}]
  // Predicated region
  $region2: #{tile.13} parent=0 // pred_check
    _
  $region3: #{tile.13} parent=0 // pred_check_branch
    %3 = sbr.rel (0) target = $region5
  $region4: #{tile.13} parent=0 // pred_region
    _
  $region5: #{tile.13} parent=0 // pred_fallthru
    _
  %v4 = vld [vmem:[%s0] ss:$0 sm:$0xff]
  %5 = vst [vmem:[%s1] sm:$0xf] %v4

// kernel: mul.13
$region0: #{mul.13}
  %s0 = inlined_call_operand.vmem [shape: f32[4,4], index: 0, kind: input, shape index: {}]
  %s1 = inlined_call_operand.vmem [shape: f32[16], index: 1, kind: output, shape index: {}]
  $region1: #{mul.13} parent=0
    #allocation0 [shape = 'u8[4096]{0}', space=vmem, size = 0x1000, scoped, tag = 'scoped mem for output reshape']
    #allocation1 [shape = 'u8[4096]{0}', space=vmem, size = 0x1000, scoped, tag = 'scoped mem for input reshape']
    %s3 = sshllo.u32 0, 4
    %v4 = vld [vmem:[%s0] sm:%s3]
    %5 = vst [vmem:[#allocation1] sm:%s3] %v4
    %v6 = vld [vmem:[#allocation1] sm:$0x1]
    %vm7 = vcmask 31744
    %8 = vst.msk [vmem:[#allocation0] sm:$0x1] %vm7, %v6
    %s9 = scalar_lea.vmem [#allocation1], 3
    %v10 = vld [vmem:[%s9] sm:$0x1]
    %11 = vrot.lane.b32.xlu0 %v10, 12
    %v12 = vpop.permute.xlu0 %11
    %vm13 = vcmask 130144
    %14 = vst.msk [vmem:[#allocation0] sm:$0x1] %vm13, %v12
    %s15 = scalar_lea.vmem [#allocation1], 2
    %v16 = vld [vmem:[%s15] sm:$0x1]
    %17 = vrot.lane.b32.xlu0 %v16, 8
    %v18 = vpop.permute.xlu0 %17
    %vm19 = vcmask 97344
    %20 = vst.msk [vmem:[#allocation0] sm:$0x1] %vm19, %v18
    %s21 = scalar_lea.vmem [#allocation1], 1
    %v22 = vld [vmem:[%s21] sm:$0x1]
    %23 = vrot.lane.b32.xlu0 %v22, 4
    %v24 = vpop.permute.xlu0 %23
    %vm25 = vcmask 64544
    %26 = vst.msk [vmem:[#allocation0] sm:$0x1] %vm25, %v24
    %s28 = sshllo.u32 0, 1
    %v30 = vld [vmem:[#allocation0] sm:%s28]
    %s31 = sshllo.u32 0, 1
    %32 = vst [vmem:[%s1] sm:%s31] %v30

// kernel: unet_innermost_forward.3
$region0: #{unet_innermost_forward.3}
  #allocation0 [shape = 'u32[]', space=smem, size = 0x4, offset = 0x4, fixed_abs, tag = 'smem constant byte address 0x4 - core index']
  #allocation1 [shape = 'u32[144,128]{1,0:T(1,128)}', space=vmem, size = 0x12000, scoped, tag = 'internal scratch']
  %s0 = inlined_call_operand.vmem [shape: bf16[512,72], index: 0, kind: input, shape index: {}]
  %s1 = inlined_call_operand.vmem [shape: bf16[72,128], index: 1, kind: input, shape index: {}]
  %s2 = inlined_call_operand.vmem [shape: f32[1,128], index: 2, kind: input, shape index: {}]
  %s3 = inlined_call_operand.vmem [shape: f32[512,128], index: 3, kind: output, shape index: {}]
  %s4 = sld [smem:[#allocation0]]
  $region45: #{unet_innermost_forward.3} parent=0
    _
  %s6 = ssub.s32 1, %s4
  %s7 = scalar_select 0, %s6, %s4
  loop: start=0, step=1, limit=4
  $region2: #{unet_innermost_forward.3} parent=0 // loop_pre_header
    _
  $region3: #{unet_innermost_forward.3} parent=0 // loop_header
    %s9 = sphi 0, %s13
    %p10 = scmp.ge.s32.totalorder %s9, 4
    %s19 = sphi 0, %s21
    %s22 = sphi 0, %s19
    %s23 = sphi 0, %s22
    %s39 = sphi 0, %s23
    %s43 = sphi 0, %s43
    %s45 = sphi 0, %s43
    %s46 = sphi 0, %s45
    %s60 = sphi 0, %s46
    %s64 = sphi 0, %s64
    %s66 = sphi 0, %s64
    %s67 = sphi 0, %s66
    %s81 = sphi 0, %s67
    %s87 = sphi 0, %s89
    %s90 = sphi 0, %s87
    %s91 = sphi 0, %s90
    %s107 = sphi 0, %s91
  $region4: #{unet_innermost_forward.3} parent=0 // loop_header_branch
    %12 = sbr.rel (%p10) target = $region8
  $region5: #{unet_innermost_forward.3} parent=0 // loop_body
    %s14 = ssub.s32 %s9, 1
    %s15 = ssub.s32 %s9, 2
    %s16 = sadd.s32 %s9, 1
    %s17 = ssub.s32 %s9, %s16
    %p18 = scmp.eq.s32.totalorder %s17, 0
    %s20 = sadd.s32 %s19, 1
    %s21 = scalar_select %p18, %s19, %s20
    %p24 = pneg %p18
    %p25 = scmp.eq.s32.totalorder %s9, 1
    %p26 = por %p24, %p25
    %p27 = scmp.ne.s32.totalorder %s19, %s22
    %p28 = scmp.eq.s32.totalorder %s9, 0
    %p29 = por %p27, %p28
    %p30 = scmp.ne.s32.totalorder %s19, %s22
    %p31 = scmp.eq.s32.totalorder %s14, 1
    %p32 = por %p30, %p31
    %p33 = scmp.ne.s32.totalorder %s22, %s23
    %p34 = scmp.eq.s32.totalorder %s14, 0
    %p35 = por %p33, %p34
    %p36 = scmp.ne.s32.totalorder %s22, %s23
    %p37 = scmp.eq.s32.totalorder %s15, 1
    %p38 = por %p36, %p37
    %p40 = scmp.ne.s32.totalorder %s23, %s39
    %p41 = scmp.eq.s32.totalorder %s15, 0
    %p42 = por %p40, %p41
    %s44 = sadd.s32 %s43, 1
    %p47 = scmp.eq.s32.totalorder %s9, 1
    %p48 = scmp.ne.s32.totalorder %s43, %s45
    %p49 = scmp.eq.s32.totalorder %s9, 0
    %p50 = por %p48, %p49
    %p51 = scmp.ne.s32.totalorder %s43, %s45
    %p52 = scmp.eq.s32.totalorder %s14, 1
    %p53 = por %p51, %p52
    %p54 = scmp.ne.s32.totalorder %s45, %s46
    %p55 = scmp.eq.s32.totalorder %s14, 0
    %p56 = por %p54, %p55
    %p57 = scmp.ne.s32.totalorder %s45, %s46
    %p58 = scmp.eq.s32.totalorder %s15, 1
    %p59 = por %p57, %p58
    %p61 = scmp.ne.s32.totalorder %s46, %s60
    %p62 = scmp.eq.s32.totalorder %s15, 0
    %p63 = por %p61, %p62
    %s65 = sadd.s32 %s64, 1
    %p68 = scmp.eq.s32.totalorder %s9, 1
    %p69 = scmp.ne.s32.totalorder %s64, %s66
    %p70 = scmp.eq.s32.totalorder %s9, 0
    %p71 = por %p69, %p70
    %p72 = scmp.ne.s32.totalorder %s64, %s66
    %p73 = scmp.eq.s32.totalorder %s14, 1
    %p74 = por %p72, %p73
    %p75 = scmp.ne.s32.totalorder %s66, %s67
    %p76 = scmp.eq.s32.totalorder %s14, 0
    %p77 = por %p75, %p76
    %p78 = scmp.ne.s32.totalorder %s66, %s67
    %p79 = scmp.eq.s32.totalorder %s15, 1
    %p80 = por %p78, %p79
    %p82 = scmp.ne.s32.totalorder %s67, %s81
    %p83 = scmp.eq.s32.totalorder %s15, 0
    %p84 = por %p82, %p83
    %s85 = ssub.s32 %s9, %s16
    %p86 = scmp.eq.s32.totalorder %s85, 0
    %s88 = sadd.s32 %s87, 1
    %s89 = scalar_select %p86, %s87, %s88
    %p92 = pneg %p86
    %p93 = scmp.eq.s32.totalorder %s9, 1
    %p94 = por %p92, %p93
    %p95 = scmp.ne.s32.totalorder %s87, %s90
    %p96 = scmp.eq.s32.totalorder %s9, 0
    %p97 = por %p95, %p96
    %p98 = scmp.ne.s32.totalorder %s87, %s90
    %p99 = scmp.eq.s32.totalorder %s14, 1
    %p100 = por %p98, %p99
    %p101 = scmp.ne.s32.totalorder %s90, %s91
    %p102 = scmp.eq.s32.totalorder %s14, 0
    %p103 = por %p101, %p102
    %p104 = scmp.ne.s32.totalorder %s90, %s91
    %p105 = scmp.eq.s32.totalorder %s15, 1
    %p106 = por %p104, %p105
    %p108 = scmp.ne.s32.totalorder %s91, %s107
    %p109 = scmp.eq.s32.totalorder %s15, 0
    %p110 = por %p108, %p109
    %p111 = scmp.le.s32.totalorder 1, %s9
    %p112 = scmp.lt.s32.totalorder %s9, 3
    %p113 = pnand %p111, %p112
    %p114 = pneg %p113
    // Predicated region
    $region9: #{unet_innermost_forward.3} parent=5 // pred_check
      _
    $region10: #{unet_innermost_forward.3} parent=5 // pred_check_branch
      %116 = sbr.rel (%p113) target = $region12
    $region11: #{unet_innermost_forward.3} parent=5 // pred_region
      %s117 = ssub.s32 %s9, 1
      // Predicated region
      $region13: #{unet_innermost_forward.3} parent=11 // pred_check
        %p118 = pneg %p56
      $region14: #{unet_innermost_forward.3} parent=11 // pred_check_branch
        %120 = sbr.rel (%p118) target = $region16
      $region15: #{unet_innermost_forward.3} parent=11 // pred_region
        _
      $region16: #{unet_innermost_forward.3} parent=11 // pred_fallthru
        _
      // Predicated region
      $region17: #{unet_innermost_forward.3} parent=11 // pred_check
        %p121 = pneg %p77
      $region18: #{unet_innermost_forward.3} parent=11 // pred_check_branch
        %123 = sbr.rel (%p121) target = $region20
      $region19: #{unet_innermost_forward.3} parent=11 // pred_region
        _
      $region20: #{unet_innermost_forward.3} parent=11 // pred_fallthru
        _
    $region12: #{unet_innermost_forward.3} parent=5 // pred_fallthru
      _
    %p124 = scmp.lt.s32.totalorder %s9, 2
    // Predicated region
    $region21: #{unet_innermost_forward.3} parent=5 // pred_check
      %p125 = pneg %p124
    $region22: #{unet_innermost_forward.3} parent=5 // pred_check_branch
      %127 = sbr.rel (%p125) target = $region24
    $region23: #{unet_innermost_forward.3} parent=5 // pred_region
      // Predicated region
      $region25: #{unet_innermost_forward.3} parent=23 // pred_check
        %p128 = pneg %p29
      $region26: #{unet_innermost_forward.3} parent=23 // pred_check_branch
        %130 = sbr.rel (%p128) target = $region28
      $region27: #{unet_innermost_forward.3} parent=23 // pred_region
        %s131 = smul.u32 32, %s9
        %p132 = scmp.lt.s32.totalorder %s131, 63
        %s133 = scalar_select %p132, %s131, 63
        %s134 = smul.addr %s133, 4
        %s135 = scalar_lea.vmem %s0, %s134
        %s136 = smul.u32 32, %s9
      $region28: #{unet_innermost_forward.3} parent=23 // pred_fallthru
        _
    $region24: #{unet_innermost_forward.3} parent=5 // pred_fallthru
      _
    %p137 = scmp.le.s32.totalorder 1, %s9
    %p138 = scmp.lt.s32.totalorder %s9, 3
    %p139 = pnand %p137, %p138
    %p140 = pneg %p139
    // Predicated region
    $region29: #{unet_innermost_forward.3} parent=5 // pred_check
      _
    $region30: #{unet_innermost_forward.3} parent=5 // pred_check_branch
      %142 = sbr.rel (%p139) target = $region32
    $region31: #{unet_innermost_forward.3} parent=5 // pred_region
      %s143 = ssub.s32 %s9, 1
      %s144 = smul.u32 32, %s14
      %p145 = scmp.lt.s32.totalorder %s144, 63
      %s146 = scalar_select %p145, %s144, 63
      %s147 = smul.addr %s146, 4
      %s148 = scalar_lea.vmem %s0, %s147
      %p149 = pneg %p35
      %p150 = pneg %p32
      %p151 = pneg %p56
      %p152 = pneg %p53
      %p153 = pneg %p77
      %p154 = pneg %p74
      %p155 = pneg %p103
      %p156 = pneg %p100
      %s157 = smul.u32 32, %s14
      %p158 = scmp.lt.s32.totalorder %s157, 63
      %s159 = scalar_select %p158, %s157, 63
      %s160 = smul.addr %s159, 8
      %s161 = scalar_lea.vmem %s3, %s160
      %s162 = smul.u32 32, %s14
      %p163 = scmp.lt.s32.totalorder %s162, 63
      %s164 = scalar_select %p163, %s162, 63
      %s165 = smul.addr %s164, 4
      %s166 = scalar_lea.vmem %s0, %s165
      %s167 = smul.u32 32, %s14
      %s168 = smul.u32 32, %s14
      %p169 = scmp.lt.s32.totalorder %s168, 63
      %s170 = scalar_select %p169, %s168, 63
      %s171 = smul.addr %s170, 8
      %s172 = scalar_lea.vmem %s3, %s171
      %s173 = smul.u32 32, %s14
      %v175 = vld [vmem:[%s166] sm:$0xf]
      %v176 = vld [vmem:[%s166 + $0x4] sm:$0xf]
      %v177 = vld [vmem:[%s166 + $0x8] sm:$0xf]
      %v178 = vld [vmem:[%s166 + $0xc] sm:$0xf]
      %v179 = vld [vmem:[%s166 + $0x10] sm:$0xf]
      %v180 = vld [vmem:[%s166 + $0x14] sm:$0xf]
      %v181 = vld [vmem:[%s166 + $0x18] sm:$0xf]
      %v182 = vld [vmem:[%s166 + $0x1c] sm:$0xf]
      %v183 = vld [vmem:[%s166 + $0x20] sm:$0xf]
      %v184 = vld [vmem:[%s166 + $0x24] sm:$0xf]
      %v185 = vld [vmem:[%s166 + $0x28] sm:$0xf]
      %v186 = vld [vmem:[%s166 + $0x2c] sm:$0xf]
      %v187 = vld [vmem:[%s166 + $0x30] sm:$0xf]
      %v188 = vld [vmem:[%s166 + $0x34] sm:$0xf]
      %v189 = vld [vmem:[%s166 + $0x38] sm:$0xf]
      %v190 = vld [vmem:[%s166 + $0x3c] sm:$0xf]
      %v191 = vld [vmem:[%s166 + $0x40] sm:$0xf]
      %v192 = vld [vmem:[%s166 + $0x44] sm:$0xf]
      %v193 = vld [vmem:[%s166 + $0x48] sm:$0xf]
      %v194 = vld [vmem:[%s166 + $0x4c] sm:$0xf]
      %v195 = vld [vmem:[%s166 + $0x50] sm:$0xf]
      %v196 = vld [vmem:[%s166 + $0x54] sm:$0xf]
      %v197 = vld [vmem:[%s166 + $0x58] sm:$0xf]
      %v198 = vld [vmem:[%s166 + $0x5c] sm:$0xf]
      %v199 = vld [vmem:[%s166 + $0x60] sm:$0xf]
      %v200 = vld [vmem:[%s166 + $0x64] sm:$0xf]
      %v201 = vld [vmem:[%s166 + $0x68] sm:$0xf]
      %v202 = vld [vmem:[%s166 + $0x6c] sm:$0xf]
      %v203 = vld [vmem:[%s166 + $0x70] sm:$0xf]
      %v204 = vld [vmem:[%s166 + $0x74] sm:$0xf]
      %v205 = vld [vmem:[%s166 + $0x78] sm:$0xf]
      %v206 = vld [vmem:[%s166 + $0x7c] sm:$0xf]
      %v207 = vld [vmem:[%s1] sm:$0xf]
      %v208 = vld [vmem:[%s1 + $0x4] sm:$0xf]
      %v209 = vld [vmem:[%s1 + $0x8] sm:$0xf]
      %v210 = vld [vmem:[%s1 + $0xc] sm:$0xf]
      %v211 = vld [vmem:[%s1 + $0x10] sm:$0xf]
      %v212 = vld [vmem:[%s1 + $0x14] sm:$0xf]
      %v213 = vld [vmem:[%s1 + $0x18] sm:$0xf]
      %v214 = vld [vmem:[%s1 + $0x1c] sm:$0xf]
      %v215 = vld [vmem:[%s1 + $0x20] sm:$0xf]
      %v216 = vld [vmem:[%s2] sm:$0x1]
      %v218 = vlaneseq
      %v219 = vshrl.u32 %v218, 7
      %v220 = vsub.s32 0, %v219
      %v221 = vrot.slane %v216, %v220
      %v255 = vunpack.c.l.b16 %v175
      %v256 = vunpack.c.l.b16 %v176
      %v257 = vunpack.c.l.b16 %v177
      %v258 = vunpack.c.l.b16 %v178
      %v259 = vunpack.c.l.b16 %v179
      %v260 = vunpack.c.l.b16 %v180
      %v261 = vunpack.c.l.b16 %v181
      %v262 = vunpack.c.l.b16 %v182
      %v263 = vunpack.c.l.b16 %v183
      %v264 = vunpack.c.l.b16 %v184
      %v265 = vunpack.c.l.b16 %v185
      %v266 = vunpack.c.l.b16 %v186
      %v267 = vunpack.c.l.b16 %v187
      %v268 = vunpack.c.l.b16 %v188
      %v269 = vunpack.c.l.b16 %v189
      %v270 = vunpack.c.l.b16 %v190
      %v271 = vunpack.c.l.b16 %v191
      %v272 = vunpack.c.l.b16 %v192
      %v273 = vunpack.c.l.b16 %v193
      %v274 = vunpack.c.l.b16 %v194
      %v275 = vunpack.c.l.b16 %v195
      %v276 = vunpack.c.l.b16 %v196
      %v277 = vunpack.c.l.b16 %v197
      %v278 = vunpack.c.l.b16 %v198
      %v279 = vunpack.c.l.b16 %v199
      %v280 = vunpack.c.l.b16 %v200
      %v281 = vunpack.c.l.b16 %v201
      %v282 = vunpack.c.l.b16 %v202
      %v283 = vunpack.c.l.b16 %v203
      %v284 = vunpack.c.l.b16 %v204
      %v285 = vunpack.c.l.b16 %v205
      %v286 = vunpack.c.l.b16 %v206
      %v287 = vpack.c.b16 %v256, %v255
      %v288 = vpack.c.b16 %v258, %v257
      %v289 = vpack.c.b16 %v260, %v259
      %v290 = vpack.c.b16 %v262, %v261
      %v291 = vpack.c.b16 %v264, %v263
      %v292 = vpack.c.b16 %v266, %v265
      %v293 = vpack.c.b16 %v268, %v267
      %v294 = vpack.c.b16 %v270, %v269
      %v295 = vpack.c.b16 %v272, %v271
      %v296 = vpack.c.b16 %v274, %v273
      %v297 = vpack.c.b16 %v276, %v275
      %v298 = vpack.c.b16 %v278, %v277
      %v299 = vpack.c.b16 %v280, %v279
      %v300 = vpack.c.b16 %v282, %v281
      %v301 = vpack.c.b16 %v284, %v283
      %v302 = vpack.c.b16 %v286, %v285
      %v312 = vunpack.c.l.b16 %v207
      %v313 = vunpack.c.l.b16 %v208
      %v314 = vunpack.c.l.b16 %v209
      %v315 = vunpack.c.l.b16 %v210
      %v316 = vunpack.c.l.b16 %v211
      %v317 = vunpack.c.l.b16 %v212
      %v318 = vunpack.c.l.b16 %v213
      %v319 = vunpack.c.l.b16 %v214
      %v320 = vunpack.c.l.b16 %v215
      %v321 = vpack.c.b16 %v313, %v312
      %v322 = vpack.c.b16 %v315, %v314
      %v323 = vpack.c.b16 %v317, %v316
      %v324 = vpack.c.b16 %v319, %v318
      %v325 = vpack.c.b16 %v320, %v320
      %vm330 = vcmask 588800
      %v332 = vsel %vm330, %v287, 0
      %v335 = vsel %vm330, %v288, 0
      %v338 = vsel %vm330, %v289, 0
      %v341 = vsel %vm330, %v290, 0
      %v344 = vsel %vm330, %v291, 0
      %v347 = vsel %vm330, %v292, 0
      %v350 = vsel %vm330, %v293, 0
      %v353 = vsel %vm330, %v294, 0
      %v356 = vsel %vm330, %v295, 0
      %v359 = vsel %vm330, %v296, 0
      %v362 = vsel %vm330, %v297, 0
      %v365 = vsel %vm330, %v298, 0
      %v368 = vsel %vm330, %v299, 0
      %v371 = vsel %vm330, %v300, 0
      %v374 = vsel %vm330, %v301, 0
      %v377 = vsel %vm330, %v302, 0
      %vm379 = vcmask 1043456
      %v381 = vsel %vm379, %v325, 0
      %383 = vmatprep.subr.bf16.mxu0 0
      %384 = vmatpush1.bf16.msra.mxu0 %v321
      %385 = vmatprep.subr.bf16.mxu0 0
      %386 = vmatpush1.bf16.msra.mxu0 %v322
      %387 = vmatprep.subr.bf16.mxu0 0
      %388 = vmatpush1.bf16.msra.mxu0 %v323
      %389 = vmatprep.subr.bf16.mxu0 0
      %390 = vmatpush1.bf16.msra.mxu0 %v324
      %391 = vmatprep.subr.bf16.mxu0 0
      %392 = vmatpush1.bf16.msra.mxu0 %v381
      %393 = vmatprep.subr.bf16.mxu0 0
      %394 = vmatpush1.bf16.msra.mxu0 0
      %395 = vmatprep.subr.bf16.mxu0 0
      %396 = vmatpush1.bf16.msra.mxu0 0
      %397 = vmatprep.subr.bf16.mxu0 0
      %398 = vmatpush1.bf16.msra.mxu0 0
      %399 = vmatprep.subr.bf16.mxu0 0
      %400 = vmatpush1.bf16.msra.mxu0 0
      %401 = vmatprep.subr.bf16.mxu0 0
      %402 = vmatpush1.bf16.msra.mxu0 0
      %403 = vmatprep.subr.bf16.mxu0 0
      %404 = vmatpush1.bf16.msra.mxu0 0
      %405 = vmatprep.subr.bf16.mxu0 0
      %406 = vmatpush1.bf16.msra.mxu0 0
      %407 = vmatprep.subr.bf16.mxu0 0
      %408 = vmatpush1.bf16.msra.mxu0 0
      %409 = vmatprep.subr.bf16.mxu0 0
      %410 = vmatpush1.bf16.msra.mxu0 0
      %411 = vmatprep.subr.bf16.mxu0 0
      %412 = vmatpush1.bf16.msra.mxu0 0
      %413 = vmatprep.subr.bf16.mxu0 0
      %414 = vmatpush1.bf16.msra.mxu0 0
      %415 = vmatprep.mubr.bf16.mxu0 0
      %416 = vmatmul.mubr.bf16.gmra.mrb[0].mxu0 %v332
      %v417 = vpop.f32.mrb[0].mxu0
      %v418 = vadd.f32 %v221, %v417
      %v419 = vpop.f32.mrb[0].mxu0
      %v420 = vpop.f32.mrb[0].mxu0
      %v421 = vadd.f32 %v221, %v420
      %v422 = vpop.f32.mrb[0].mxu0
      %423 = vmatprep.mubr.bf16.mxu0 0
      %424 = vmatmul.mubr.bf16.gmra.mrb[0].mxu0 %v335
      %v425 = vpop.f32.mrb[0].mxu0
      %v426 = vadd.f32 %v221, %v425
      %v427 = vpop.f32.mrb[0].mxu0
      %v428 = vpop.f32.mrb[0].mxu0
      %v429 = vadd.f32 %v221, %v428
      %v430 = vpop.f32.mrb[0].mxu0
      %431 = vmatprep.mubr.bf16.mxu0 0
      %432 = vmatmul.mubr.bf16.gmra.mrb[0].mxu0 %v338
      %v433 = vpop.f32.mrb[0].mxu0
      %v434 = vadd.f32 %v221, %v433
      %v435 = vpop.f32.mrb[0].mxu0
      %v436 = vpop.f32.mrb[0].mxu0
      %v437 = vadd.f32 %v221, %v436
      %v438 = vpop.f32.mrb[0].mxu0
      %439 = vmatprep.mubr.bf16.mxu0 0
      %440 = vmatmul.mubr.bf16.gmra.mrb[0].mxu0 %v341
      %v441 = vpop.f32.mrb[0].mxu0
      %v442 = vadd.f32 %v221, %v441
      %v443 = vpop.f32.mrb[0].mxu0
      %v444 = vpop.f32.mrb[0].mxu0
      %v445 = vadd.f32 %v221, %v444
      %v446 = vpop.f32.mrb[0].mxu0
      %447 = vmatprep.mubr.bf16.mxu0 0
      %448 = vmatmul.mubr.bf16.gmra.mrb[0].mxu0 %v344
      %v449 = vpop.f32.mrb[0].mxu0
      %v450 = vadd.f32 %v221, %v449
      %v451 = vpop.f32.mrb[0].mxu0
      %v452 = vpop.f32.mrb[0].mxu0
      %v453 = vadd.f32 %v221, %v452
      %v454 = vpop.f32.mrb[0].mxu0
      %455 = vmatprep.mubr.bf16.mxu0 0
      %456 = vmatmul.mubr.bf16.gmra.mrb[0].mxu0 %v347
      %v457 = vpop.f32.mrb[0].mxu0
      %v458 = vadd.f32 %v221, %v457
      %v459 = vpop.f32.mrb[0].mxu0
      %v460 = vpop.f32.mrb[0].mxu0
      %v461 = vadd.f32 %v221, %v460
      %v462 = vpop.f32.mrb[0].mxu0
      %463 = vmatprep.mubr.bf16.mxu0 0
      %464 = vmatmul.mubr.bf16.gmra.mrb[0].mxu0 %v350
      %v465 = vpop.f32.mrb[0].mxu0
      %v466 = vadd.f32 %v221, %v465
      %v467 = vpop.f32.mrb[0].mxu0
      %v468 = vpop.f32.mrb[0].mxu0
      %v469 = vadd.f32 %v221, %v468
      %v470 = vpop.f32.mrb[0].mxu0
      %471 = vmatprep.mubr.bf16.mxu0 0
      %472 = vmatmul.mubr.bf16.gmra.mrb[0].mxu0 %v353
      %v473 = vpop.f32.mrb[0].mxu0
      %v474 = vadd.f32 %v221, %v473
      %v475 = vpop.f32.mrb[0].mxu0
      %v476 = vpop.f32.mrb[0].mxu0
      %v477 = vadd.f32 %v221, %v476
      %v478 = vpop.f32.mrb[0].mxu0
      %479 = vmatprep.mubr.bf16.mxu0 0
      %480 = vmatmul.mubr.bf16.gmra.mrb[0].mxu0 %v356
      %v481 = vpop.f32.mrb[0].mxu0
      %v482 = vadd.f32 %v221, %v481
      %v483 = vpop.f32.mrb[0].mxu0
      %v484 = vpop.f32.mrb[0].mxu0
      %v485 = vadd.f32 %v221, %v484
      %v486 = vpop.f32.mrb[0].mxu0
      %487 = vmatprep.mubr.bf16.mxu0 0
      %488 = vmatmul.mubr.bf16.gmra.mrb[0].mxu0 %v359
      %v489 = vpop.f32.mrb[0].mxu0
      %v490 = vadd.f32 %v221, %v489
      %v491 = vpop.f32.mrb[0].mxu0
      %v492 = vpop.f32.mrb[0].mxu0
      %v493 = vadd.f32 %v221, %v492
      %v494 = vpop.f32.mrb[0].mxu0
      %495 = vmatprep.mubr.bf16.mxu0 0
      %496 = vmatmul.mubr.bf16.gmra.mrb[0].mxu0 %v362
      %v497 = vpop.f32.mrb[0].mxu0
      %v498 = vadd.f32 %v221, %v497
      %v499 = vpop.f32.mrb[0].mxu0
      %v500 = vpop.f32.mrb[0].mxu0
      %v501 = vadd.f32 %v221, %v500
      %v502 = vpop.f32.mrb[0].mxu0
      %503 = vmatprep.mubr.bf16.mxu0 0
      %504 = vmatmul.mubr.bf16.gmra.mrb[0].mxu0 %v365
      %v505 = vpop.f32.mrb[0].mxu0
      %v506 = vadd.f32 %v221, %v505
      %v507 = vpop.f32.mrb[0].mxu0
      %v508 = vpop.f32.mrb[0].mxu0
      %v509 = vadd.f32 %v221, %v508
      %v510 = vpop.f32.mrb[0].mxu0
      %511 = vmatprep.mubr.bf16.mxu0 0
      %512 = vmatmul.mubr.bf16.gmra.mrb[0].mxu0 %v368
      %v513 = vpop.f32.mrb[0].mxu0
      %v514 = vadd.f32 %v221, %v513
      %v515 = vpop.f32.mrb[0].mxu0
      %v516 = vpop.f32.mrb[0].mxu0
      %v517 = vadd.f32 %v221, %v516
      %v518 = vpop.f32.mrb[0].mxu0
      %519 = vmatprep.mubr.bf16.mxu0 0
      %520 = vmatmul.mubr.bf16.gmra.mrb[0].mxu0 %v371
      %v521 = vpop.f32.mrb[0].mxu0
      %v522 = vadd.f32 %v221, %v521
      %v523 = vpop.f32.mrb[0].mxu0
      %v524 = vpop.f32.mrb[0].mxu0
      %v525 = vadd.f32 %v221, %v524
      %v526 = vpop.f32.mrb[0].mxu0
      %527 = vmatprep.mubr.bf16.mxu0 0
      %528 = vmatmul.mubr.bf16.gmra.mrb[0].mxu0 %v374
      %v529 = vpop.f32.mrb[0].mxu0
      %v530 = vadd.f32 %v221, %v529
      %v531 = vpop.f32.mrb[0].mxu0
      %v532 = vpop.f32.mrb[0].mxu0
      %v533 = vadd.f32 %v221, %v532
      %v534 = vpop.f32.mrb[0].mxu0
      %535 = vmatprep.mubr.bf16.mxu0 0
      %536 = vmatmul.mubr.bf16.gmra.mrb[0].mxu0 %v377
      %v537 = vpop.f32.mrb[0].mxu0
      %v538 = vadd.f32 %v221, %v537
      %v539 = vpop.f32.mrb[0].mxu0
      %v540 = vpop.f32.mrb[0].mxu0
      %v541 = vadd.f32 %v221, %v540
      %v542 = vpop.f32.mrb[0].mxu0
      %543 = vdwg.mxu0
      %544 = vst [vmem:[%s172] sm:$0xff] %v418
      %545 = vst [vmem:[%s172 + $0x8] sm:$0xff] %v421
      %546 = vst [vmem:[%s172 + $0x10] sm:$0xff] %v426
      %547 = vst [vmem:[%s172 + $0x18] sm:$0xff] %v429
      %548 = vst [vmem:[%s172 + $0x20] sm:$0xff] %v434
      %549 = vst [vmem:[%s172 + $0x28] sm:$0xff] %v437
      %550 = vst [vmem:[%s172 + $0x30] sm:$0xff] %v442
      %551 = vst [vmem:[%s172 + $0x38] sm:$0xff] %v445
      %552 = vst [vmem:[%s172 + $0x40] sm:$0xff] %v450
      %553 = vst [vmem:[%s172 + $0x48] sm:$0xff] %v453
      %554 = vst [vmem:[%s172 + $0x50] sm:$0xff] %v458
      %555 = vst [vmem:[%s172 + $0x58] sm:$0xff] %v461
      %556 = vst [vmem:[%s172 + $0x60] sm:$0xff] %v466
      %557 = vst [vmem:[%s172 + $0x68] sm:$0xff] %v469
      %558 = vst [vmem:[%s172 + $0x70] sm:$0xff] %v474
      %559 = vst [vmem:[%s172 + $0x78] sm:$0xff] %v477
      %560 = vst [vmem:[%s172 + $0x80] sm:$0xff] %v482
      %561 = vst [vmem:[%s172 + $0x88] sm:$0xff] %v485
      %562 = vst [vmem:[%s172 + $0x90] sm:$0xff] %v490
      %563 = vst [vmem:[%s172 + $0x98] sm:$0xff] %v493
      %564 = vst [vmem:[%s172 + $0xa0] sm:$0xff] %v498
      %565 = vst [vmem:[%s172 + $0xa8] sm:$0xff] %v501
      %566 = vst [vmem:[%s172 + $0xb0] sm:$0xff] %v506
      %567 = vst [vmem:[%s172 + $0xb8] sm:$0xff] %v509
      %568 = vst [vmem:[%s172 + $0xc0] sm:$0xff] %v514
      %569 = vst [vmem:[%s172 + $0xc8] sm:$0xff] %v517
      %570 = vst [vmem:[%s172 + $0xd0] sm:$0xff] %v522
      %571 = vst [vmem:[%s172 + $0xd8] sm:$0xff] %v525
      %572 = vst [vmem:[%s172 + $0xe0] sm:$0xff] %v530
      %573 = vst [vmem:[%s172 + $0xe8] sm:$0xff] %v533
      %574 = vst [vmem:[%s172 + $0xf0] sm:$0xff] %v538
      %575 = vst [vmem:[%s172 + $0xf8] sm:$0xff] %v541
      %s576 = smul.u32 32, %s14
      %p577 = scmp.lt.s32.totalorder %s576, 63
      %s578 = scalar_select %p577, %s576, 63
      %s579 = smul.addr %s578, 8
      %s580 = scalar_lea.vmem %s3, %s579
      // Predicated region
      $region33: #{unet_innermost_forward.3} parent=31 // pred_check
        %p581 = pneg %p100
      $region34: #{unet_innermost_forward.3} parent=31 // pred_check_branch
        %583 = sbr.rel (%p581) target = $region36
      $region35: #{unet_innermost_forward.3} parent=31 // pred_region
        %s584 = smul.u32 32, %s14
      $region36: #{unet_innermost_forward.3} parent=31 // pred_fallthru
        _
    $region32: #{unet_innermost_forward.3} parent=5 // pred_fallthru
      _
    %p585 = scmp.le.s32.totalorder 2, %s9
    // Predicated region
    $region37: #{unet_innermost_forward.3} parent=5 // pred_check
      %p586 = pneg %p585
    $region38: #{unet_innermost_forward.3} parent=5 // pred_check_branch
      %588 = sbr.rel (%p586) target = $region40
    $region39: #{unet_innermost_forward.3} parent=5 // pred_region
      %s589 = ssub.s32 %s9, 2
      // Predicated region
      $region41: #{unet_innermost_forward.3} parent=39 // pred_check
        %p590 = pneg %p106
      $region42: #{unet_innermost_forward.3} parent=39 // pred_check_branch
        %592 = sbr.rel (%p590) target = $region44
      $region43: #{unet_innermost_forward.3} parent=39 // pred_region
        %s593 = smul.u32 32, %s15
        %p594 = scmp.lt.s32.totalorder %s593, 63
        %s595 = scalar_select %p594, %s593, 63
        %s596 = smul.addr %s595, 8
        %s597 = scalar_lea.vmem %s3, %s596
      $region44: #{unet_innermost_forward.3} parent=39 // pred_fallthru
        _
    $region40: #{unet_innermost_forward.3} parent=5 // pred_fallthru
      _
  $region6: #{unet_innermost_forward.3} parent=0 // loop_footer
    %s13 = sadd.s32 1, %s9
  $region7: #{unet_innermost_forward.3} parent=0 // loop_footer_branch
    %8 = sbr.rel target = $region3
  $region8: #{unet_innermost_forward.3} parent=0 // loop_exit
    _

</llo_original>
